<compile_context>
chip_gen: v5e
topology: v5e:2x2
jax: 0.10.0
libtpu: 0.0.40
codegen_flags: <defaults>
</compile_context>

<pallas_src>
import jax
import jax.numpy as jnp
from jax.experimental import pallas as pl
from jax.experimental.pallas import tpu as pltpu


def _round_up(x, m):
    return (x + m - 1) // m * m


def _elu(x):
    # ELU(alpha=1). The where() selects the branch, so no clamp on the exp arg
    # (an inf on the discarded positive side is harmless) -> one VPU op saved.
    return jnp.where(x > 0, x, jnp.exp(x) - 1.0)


# ----------------------------- kernels ---------------------------------------


def _nnodef_kernel_tv(x_ref, t_ref, w1x_ref, w1t_ref, b1_ref, w2_ref, b2_ref,
                      w3_ref, b3_ref, o_ref):
    # Layer 1: tiny-K (= in_dim) matmul in f32 + rank-1 time term on the VPU.
    pre = jnp.dot(x_ref[...], w1x_ref[...], preferred_element_type=jnp.float32)
    pre = pre + t_ref[...] * w1t_ref[...]          # [TM,1] * [1,H] broadcast
    h = _elu(pre + b1_ref[...])
    # Layers 2/3: 128-wide-K matmuls on the MXU, bf16 inputs, f32 accumulation.
    h = jnp.dot(h.astype(jnp.bfloat16), w2_ref[...],
                preferred_element_type=jnp.float32)
    h = _elu(h + b2_ref[...])
    out = jnp.dot(h.astype(jnp.bfloat16), w3_ref[...],
                  preferred_element_type=jnp.float32)
    o_ref[...] = (out + b3_ref[...]).astype(o_ref.dtype)


def _nnodef_kernel_ti(x_ref, w1x_ref, b1_ref, w2_ref, b2_ref, w3_ref, b3_ref,
                      o_ref):
    pre = jnp.dot(x_ref[...], w1x_ref[...], preferred_element_type=jnp.float32)
    h = _elu(pre + b1_ref[...])
    h = jnp.dot(h.astype(jnp.bfloat16), w2_ref[...],
                preferred_element_type=jnp.float32)
    h = _elu(h + b2_ref[...])
    out = jnp.dot(h.astype(jnp.bfloat16), w3_ref[...],
                  preferred_element_type=jnp.float32)
    o_ref[...] = (out + b3_ref[...]).astype(o_ref.dtype)


# ----------------------------- wrapper ----------------------------------------


def _choose_tm(M, tm_max=2048, min_steps=2):
    """Row-tile size: multiple of 8, as large as tm_max to amortize the ~0.35us
    per-grid-step overhead, but keeping >= min_steps grid steps so the
    'parallel' row axis can be sharded across v7x's two TensorCores."""
    M8 = _round_up(max(M, 1), 8)
    if M8 <= 8 * min_steps:
        return 8
    return max(8, min(tm_max, _round_up(pl.cdiv(M8, min_steps), 8)))


def nnodef_forward(x, t, padded_params, *, time_invariant=False, tm=None):
    """x: [M, in_dim] (M = batch * ODE timesteps, flattened), t: [M, 1] or None.
    padded_params: output of pad_nnodef_params.  Returns [M, in_dim]."""
    M, in_dim = x.shape
    if tm is None:
        tm = _choose_tm(M)
    tm = max(8, _round_up(tm, 8))           # (8,128) sublane constraint
    M_pad = _round_up(M, tm)
    if M_pad != M:                          # rare edge case; demo avoids it
        x = jnp.pad(x, ((0, M_pad - M), (0, 0)))
        if not time_invariant:
            t = jnp.pad(t, ((0, M_pad - M), (0, 0)))
    grid = (M_pad // tm,)

    row_spec = lambda shape: pl.BlockSpec(shape, lambda i: (i, 0))
    # Constant index_map -> weight/bias tiles stay VMEM-resident across steps.
    # NOTE: pipeline_mode=pl.Buffered(1) would also drop the unused second
    # buffer (~70 KB total here); skipped as negligible at these sizes.
    res_spec = lambda a: pl.BlockSpec(a.shape, lambda i: (0, 0))

    if time_invariant:
        w1x, b1, w2, b2, w3, b3 = padded_params
        kernel = _nnodef_kernel_ti
        operands = (x, w1x, b1, w2, b2, w3, b3)
        in_specs = [row_spec((tm, in_dim))] + [res_spec(a) for a in operands[1:]]
    else:
        w1x, w1t, b1, w2, b2, w3, b3 = padded_params
        kernel = _nnodef_kernel_tv
        operands = (x, t, w1x, w1t, b1, w2, b2, w3, b3)
        in_specs = ([row_spec((tm, in_dim)), row_spec((tm, 1))]
                    + [res_spec(a) for a in operands[2:]])

    out = pl.pallas_call(
        kernel,
        out_shape=jax.ShapeDtypeStruct((M_pad, in_dim), x.dtype),
        grid=grid,
        in_specs=in_specs,
        out_specs=pl.BlockSpec((tm, in_dim), lambda i: (i, 0)),
        compiler_params=pltpu.CompilerParams(
            dimension_semantics=("parallel",)),
    )(*operands)
    return out if M_pad == M else out[:M]


# ----------------------------- params -----------------------------------------


def init_nnodef_params(key, in_dim=4, hid_dim=20, time_invariant=False,
                       dtype=jnp.float32):
    """nn.Linear-style U(-1/sqrt(fan_in), 1/sqrt(fan_in)) init.  Weights stored
    pre-transposed as [in_features, out_features]."""
    k_in = in_dim if time_invariant else in_dim + 1
    ks = jax.random.split(key, 6)

    def linear(kw, kb, fan_in, fan_out):
        bound = 1.0 / (fan_in ** 0.5)
        w = jax.random.uniform(kw, (fan_in, fan_out), dtype, -bound, bound)
        b = jax.random.uniform(kb, (1, fan_out), dtype, -bound, bound)
        return w, b

    w1, b1 = linear(ks[0], ks[1], k_in, hid_dim)
    w2, b2 = linear(ks[2], ks[3], hid_dim, hid_dim)
    w3, b3 = linear(ks[4], ks[5], hid_dim, in_dim)
    return (w1, b1, w2, b2, w3, b3)


def pad_nnodef_params(params, *, in_dim, time_invariant=False, lane=128,
                      matmul_dtype=jnp.bfloat16):
    """One-time packing: zero-pad the hidden dim to the 128-lane width, split
    lin1 into an x part (f32, K=in_dim) and a rank-1 time row, and store the
    two 128-wide-K matmul weights in bf16 (MXU-native)."""
    w1, b1, w2, b2, w3, b3 = params
    hid = w1.shape[1]
    out_dim = w3.shape[1]
    H = _round_up(hid, lane)

    def pad2(a, rows, cols, dt):
        z = jnp.zeros((rows, cols), dt)
        return z.at[:a.shape[0], :a.shape[1]].set(a.astype(dt))

    w1x = pad2(w1[:in_dim], in_dim, H, jnp.float32)
    b1p = pad2(b1, 1, H, jnp.float32)
    w2p = pad2(w2, H, H, matmul_dtype)
    b2p = pad2(b2, 1, H, jnp.float32)
    w3p = pad2(w3, H, out_dim, matmul_dtype)
    b3p = b3.astype(jnp.float32)
    if time_invariant:
        return (w1x, b1p, w2p, b2p, w3p, b3p)
    w1t = pad2(w1[in_dim:in_dim + 1], 1, H, jnp.float32)
    return (w1x, w1t, b1p, w2p, b2p, w3p, b3p)


# ----------------------------- references -------------------------------------


def nnodef_reference(x, t, params, time_invariant=False):
    """Pure-f32 reference with identical math to the PyTorch module."""
    w1, b1, w2, b2, w3, b3 = params
    xc = x if time_invariant else jnp.concatenate([x, t], axis=-1)
    h = _elu(xc @ w1 + b1)
    h = _elu(h @ w2 + b2)
    return h @ w3 + b3


def nnodef_reference_mixed(x, t, params, time_invariant=False):
    """Same bf16/f32 mixed precision as the kernel, in plain XLA (tight check)."""
    w1, b1, w2, b2, w3, b3 = params
    in_dim = x.shape[1]
    bf = jnp.bfloat16
    if time_invariant:
        pre = x @ w1
    else:
        pre = x @ w1[:in_dim] + t * w1[in_dim:in_dim + 1]
    h = _elu(pre + b1)
    h = _elu(jnp.dot(h.astype(bf), w2.astype(bf),
                     preferred_element_type=jnp.float32) + b2)
    return jnp.dot(h.astype(bf), w3.astype(bf),
                   preferred_element_type=jnp.float32) + b3


# ----------------------------- demo --------------------------------------------


if __name__ == "__main__":
    in_dim, hid_dim = 4, 20
    batch, timesteps = 8, 32
    M = batch * timesteps          # flatten (sample, ODE step) pairs

    key = jax.random.PRNGKey(0)
    k_params, k_x, k_t, k_params_ti = jax.random.split(key, 4)
    x = jax.random.normal(k_x, (M, in_dim), jnp.float32)
    t = jax.random.normal(k_t, (M, 1), jnp.float32)

    # ---- time-variant (default) path: auto tm=128 -> grid=(2,), no padding ----
    params = init_nnodef_params(k_params, in_dim, hid_dim, time_invariant=False)
    padded = pad_nnodef_params(params, in_dim=in_dim, time_invariant=False)
    out = jax.block_until_ready(nnodef_forward(x, t, padded))
    assert out.shape == (M, in_dim), out.shape

    ref_mixed = nnodef_reference_mixed(x, t, params)
    ref_f32 = nnodef_reference(x, t, params)
    err_mixed = float(jnp.max(jnp.abs(out - ref_mixed)))
    err_f32 = float(jnp.max(jnp.abs(out - ref_f32)))
    assert err_mixed < 2e-2, f"kernel vs mixed-precision reference: {err_mixed}"
    assert err_f32 < 1.5e-1, f"kernel vs f32 reference: {err_f32}"

    # ---- time-invariant path ----
    params_ti = init_nnodef_params(k_params_ti, in_dim, hid_dim,
                                   time_invariant=True)
    padded_ti = pad_nnodef_params(params_ti, in_dim=in_dim, time_invariant=True)
    out_ti = jax.block_until_ready(
        nnodef_forward(x, None, padded_ti, time_invariant=True))
    ref_ti = nnodef_reference(x, None, params_ti, time_invariant=True)
    err_ti = float(jnp.max(jnp.abs(out_ti - ref_ti)))
    assert err_ti < 1.5e-1, f"time-invariant kernel vs f32 reference: {err_ti}"

    print("KERNEL_OK")
</pallas_src>

<mosaic_0001>
module attributes {stable_mosaic.version = 11 : i64} {
  func.func @_nnodef_kernel_tv(%arg0: i32, %arg1: memref<128x4xf32, #tpu.memory_space<vmem>>, %arg2: memref<128x1xf32, #tpu.memory_space<vmem>>, %arg3: memref<4x128xf32, #tpu.memory_space<vmem>>, %arg4: memref<1x128xf32, #tpu.memory_space<vmem>>, %arg5: memref<1x128xf32, #tpu.memory_space<vmem>>, %arg6: memref<128x128xbf16, #tpu.memory_space<vmem>>, %arg7: memref<1x128xf32, #tpu.memory_space<vmem>>, %arg8: memref<128x4xbf16, #tpu.memory_space<vmem>>, %arg9: memref<1x4xf32, #tpu.memory_space<vmem>>, %arg10: memref<128x4xf32, #tpu.memory_space<vmem>>) attributes {dimension_semantics = [#tpu.dimension_semantics<parallel>], iteration_bounds = array<i64: 2>, scalar_prefetch = 0 : i64, scratch_operands = 0 : i64, tpu.core_type = #tpu.core_type<tc>, window_params = [{transform_indices = @transform_0, window_bounds = array<i64: 128, 4>}, {transform_indices = @transform_1, window_bounds = array<i64: 128, 1>}, {pipeline_mode = #tpu.pipeline_mode<synchronous>, transform_indices = @transform_2, window_bounds = array<i64: 4, 128>}, {pipeline_mode = #tpu.pipeline_mode<synchronous>, transform_indices = @transform_3, window_bounds = array<i64: 1, 128>}, {pipeline_mode = #tpu.pipeline_mode<synchronous>, transform_indices = @transform_4, window_bounds = array<i64: 1, 128>}, {pipeline_mode = #tpu.pipeline_mode<synchronous>, transform_indices = @transform_5, window_bounds = array<i64: 128, 128>}, {pipeline_mode = #tpu.pipeline_mode<synchronous>, transform_indices = @transform_6, window_bounds = array<i64: 1, 128>}, {pipeline_mode = #tpu.pipeline_mode<synchronous>, transform_indices = @transform_7, window_bounds = array<i64: 128, 4>}, {pipeline_mode = #tpu.pipeline_mode<synchronous>, transform_indices = @transform_8, window_bounds = array<i64: 1, 4>}, {transform_indices = @transform_9, window_bounds = array<i64: 128, 4>}]} {
    %c0 = arith.constant 0 : index
    %c0_0 = arith.constant 0 : index
    %0 = vector.load %arg1[%c0, %c0_0] : memref<128x4xf32, #tpu.memory_space<vmem>>, vector<128x4xf32>
    %c0_1 = arith.constant 0 : index
    %c0_2 = arith.constant 0 : index
    %1 = vector.load %arg3[%c0_1, %c0_2] : memref<4x128xf32, #tpu.memory_space<vmem>>, vector<4x128xf32>
    %cst = arith.constant dense<0.000000e+00> : vector<128x128xf32>
    %2 = tpu.matmul %0, %1, %cst {dimension_numbers = #tpu.dot_dimension_numbers<[1], [0], [0], [1], [0, 0, 1, 1], [], []>} : vector<128x4xf32>, vector<4x128xf32>, vector<128x128xf32> -> vector<128x128xf32>
    %c0_3 = arith.constant 0 : index
    %c0_4 = arith.constant 0 : index
    %3 = vector.load %arg2[%c0_3, %c0_4] : memref<128x1xf32, #tpu.memory_space<vmem>>, vector<128x1xf32>
    %c0_5 = arith.constant 0 : index
    %c0_6 = arith.constant 0 : index
    %4 = vector.load %arg4[%c0_5, %c0_6] : memref<1x128xf32, #tpu.memory_space<vmem>>, vector<1x128xf32>
    %5 = vector.broadcast %3 : vector<128x1xf32> to vector<128x128xf32>
    %6 = vector.broadcast %4 : vector<1x128xf32> to vector<128x128xf32>
    %7 = arith.mulf %5, %6 : vector<128x128xf32>
    %8 = arith.addf %2, %7 : vector<128x128xf32>
    %c0_7 = arith.constant 0 : index
    %c0_8 = arith.constant 0 : index
    %9 = vector.load %arg5[%c0_7, %c0_8] : memref<1x128xf32, #tpu.memory_space<vmem>>, vector<1x128xf32>
    %10 = vector.broadcast %9 : vector<1x128xf32> to vector<128x128xf32>
    %11 = arith.addf %8, %10 : vector<128x128xf32>
    %cst_9 = arith.constant 0.000000e+00 : f32
    %12 = vector.broadcast %cst_9 : f32 to vector<128x128xf32>
    %13 = arith.cmpf ogt, %11, %12 : vector<128x128xf32>
    %14 = math.exp %11 : vector<128x128xf32>
    %cst_10 = arith.constant 1.000000e+00 : f32
    %15 = vector.broadcast %cst_10 : f32 to vector<128x128xf32>
    %16 = arith.subf %14, %15 : vector<128x128xf32>
    %17 = arith.select %13, %11, %16 : vector<128x128xi1>, vector<128x128xf32>
    %18 = arith.truncf %17 : vector<128x128xf32> to vector<128x128xbf16>
    %c0_11 = arith.constant 0 : index
    %c0_12 = arith.constant 0 : index
    %19 = vector.load %arg6[%c0_11, %c0_12] : memref<128x128xbf16, #tpu.memory_space<vmem>>, vector<128x128xbf16>
    %cst_13 = arith.constant dense<0.000000e+00> : vector<128x128xf32>
    %20 = tpu.matmul %18, %19, %cst_13 {dimension_numbers = #tpu.dot_dimension_numbers<[1], [0], [0], [1], [0, 0, 1, 1], [], []>} : vector<128x128xbf16>, vector<128x128xbf16>, vector<128x128xf32> -> vector<128x128xf32>
    %c0_14 = arith.constant 0 : index
    %c0_15 = arith.constant 0 : index
    %21 = vector.load %arg7[%c0_14, %c0_15] : memref<1x128xf32, #tpu.memory_space<vmem>>, vector<1x128xf32>
    %22 = vector.broadcast %21 : vector<1x128xf32> to vector<128x128xf32>
    %23 = arith.addf %20, %22 : vector<128x128xf32>
    %cst_16 = arith.constant 0.000000e+00 : f32
    %24 = vector.broadcast %cst_16 : f32 to vector<128x128xf32>
    %25 = arith.cmpf ogt, %23, %24 : vector<128x128xf32>
    %26 = math.exp %23 : vector<128x128xf32>
    %cst_17 = arith.constant 1.000000e+00 : f32
    %27 = vector.broadcast %cst_17 : f32 to vector<128x128xf32>
    %28 = arith.subf %26, %27 : vector<128x128xf32>
    %29 = arith.select %25, %23, %28 : vector<128x128xi1>, vector<128x128xf32>
    %30 = arith.truncf %29 : vector<128x128xf32> to vector<128x128xbf16>
    %c0_18 = arith.constant 0 : index
    %c0_19 = arith.constant 0 : index
    %31 = vector.load %arg8[%c0_18, %c0_19] : memref<128x4xbf16, #tpu.memory_space<vmem>>, vector<128x4xbf16>
    %cst_20 = arith.constant dense<0.000000e+00> : vector<128x4xf32>
    %32 = tpu.matmul %30, %31, %cst_20 {dimension_numbers = #tpu.dot_dimension_numbers<[1], [0], [0], [1], [0, 0, 1, 1], [], []>} : vector<128x128xbf16>, vector<128x4xbf16>, vector<128x4xf32> -> vector<128x4xf32>
    %c0_21 = arith.constant 0 : index
    %c0_22 = arith.constant 0 : index
    %33 = vector.load %arg9[%c0_21, %c0_22] : memref<1x4xf32, #tpu.memory_space<vmem>>, vector<1x4xf32>
    %34 = vector.broadcast %33 : vector<1x4xf32> to vector<128x4xf32>
    %35 = arith.addf %32, %34 : vector<128x4xf32>
    %c0_23 = arith.constant 0 : index
    %c0_24 = arith.constant 0 : index
    %36 = vector.load %arg10[%c0_23, %c0_24] : memref<128x4xf32, #tpu.memory_space<vmem>>, vector<128x4xf32>
    tpu.vector_store %arg10[%c0_23, %c0_24], %35 {strides = array<i32>} : memref<128x4xf32, #tpu.memory_space<vmem>>, vector<128x4xf32>,
    return
  }
  func.func @transform_0(%arg0: i32) -> (i32, i32) {
    %c0_i32 = arith.constant 0 : i32
    %c0_i32_0 = arith.constant 0 : i32
    return %arg0, %c0_i32 : i32, i32
  }
  func.func @transform_1(%arg0: i32) -> (i32, i32) {
    %c0_i32 = arith.constant 0 : i32
    %c0_i32_0 = arith.constant 0 : i32
    return %arg0, %c0_i32 : i32, i32
  }
  func.func @transform_2(%arg0: i32) -> (i32, i32) {
    %c0_i32 = arith.constant 0 : i32
    %c0_i32_0 = arith.constant 0 : i32
    %c0_i32_1 = arith.constant 0 : i32
    return %c0_i32, %c0_i32_0 : i32, i32
  }
  func.func @transform_3(%arg0: i32) -> (i32, i32) {
    %c0_i32 = arith.constant 0 : i32
    %c0_i32_0 = arith.constant 0 : i32
    %c0_i32_1 = arith.constant 0 : i32
    return %c0_i32, %c0_i32_0 : i32, i32
  }
  func.func @transform_4(%arg0: i32) -> (i32, i32) {
    %c0_i32 = arith.constant 0 : i32
    %c0_i32_0 = arith.constant 0 : i32
    %c0_i32_1 = arith.constant 0 : i32
    return %c0_i32, %c0_i32_0 : i32, i32
  }
  func.func @transform_5(%arg0: i32) -> (i32, i32) {
    %c0_i32 = arith.constant 0 : i32
    %c0_i32_0 = arith.constant 0 : i32
    %c0_i32_1 = arith.constant 0 : i32
    return %c0_i32, %c0_i32_0 : i32, i32
  }
  func.func @transform_6(%arg0: i32) -> (i32, i32) {
    %c0_i32 = arith.constant 0 : i32
    %c0_i32_0 = arith.constant 0 : i32
    %c0_i32_1 = arith.constant 0 : i32
    return %c0_i32, %c0_i32_0 : i32, i32
  }
  func.func @transform_7(%arg0: i32) -> (i32, i32) {
    %c0_i32 = arith.constant 0 : i32
    %c0_i32_0 = arith.constant 0 : i32
    %c0_i32_1 = arith.constant 0 : i32
    return %c0_i32, %c0_i32_0 : i32, i32
  }
  func.func @transform_8(%arg0: i32) -> (i32, i32) {
    %c0_i32 = arith.constant 0 : i32
    %c0_i32_0 = arith.constant 0 : i32
    %c0_i32_1 = arith.constant 0 : i32
    return %c0_i32, %c0_i32_0 : i32, i32
  }
  func.func @transform_9(%arg0: i32) -> (i32, i32) {
    %c0_i32 = arith.constant 0 : i32
    %c0_i32_0 = arith.constant 0 : i32
    return %arg0, %c0_i32 : i32, i32
  }
}

</mosaic_0001>

<llo_original>
// kernel: tpu_custom_call.1
$region0: #{tpu_custom_call.1}
  #allocation0 [shape = 'u32[]', space=smem, size = 0x4, offset = 0x4, fixed_abs, tag = 'smem constant byte address 0x4 - core index']
  #allocation1 [shape = 'u32[72,128]{1,0:T(1,128)}', space=vmem, size = 0x9000, scoped, tag = 'internal scratch']
  %s0 = inlined_call_operand.vmem [shape: f32[256,4], index: 0, kind: input, shape index: {}]
  %s1 = inlined_call_operand.vmem [shape: f32[256,1], index: 1, kind: input, shape index: {}]
  %s2 = inlined_call_operand.vmem [shape: f32[4,128], index: 2, kind: input, shape index: {}]
  %s3 = inlined_call_operand.vmem [shape: f32[1,128], index: 3, kind: input, shape index: {}]
  %s4 = inlined_call_operand.vmem [shape: f32[1,128], index: 4, kind: input, shape index: {}]
  %s5 = inlined_call_operand.vmem [shape: bf16[128,128], index: 5, kind: input, shape index: {}]
  %s6 = inlined_call_operand.vmem [shape: f32[1,128], index: 6, kind: input, shape index: {}]
  %s7 = inlined_call_operand.vmem [shape: bf16[128,4], index: 7, kind: input, shape index: {}]
  %s8 = inlined_call_operand.vmem [shape: f32[1,4], index: 8, kind: input, shape index: {}]
  %s9 = inlined_call_operand.vmem [shape: f32[256,4], index: 9, kind: output, shape index: {}]
  %s10 = sld [smem:[#allocation0]]
  $region69: #{tpu_custom_call.1} parent=0
    _
  %s12 = ssub.s32 1, %s10
  %s13 = scalar_select 0, %s12, %s10
  loop: start=0, step=1, limit=4
  $region2: #{tpu_custom_call.1} parent=0 // loop_pre_header
    _
  $region3: #{tpu_custom_call.1} parent=0 // loop_header
    %s15 = sphi 0, %s19
    %p16 = scmp.ge.s32.totalorder %s15, 4
    %s25 = sphi 0, %s27
    %s28 = sphi 0, %s25
    %s29 = sphi 0, %s28
    %s45 = sphi 0, %s29
    %s51 = sphi 0, %s53
    %s54 = sphi 0, %s51
    %s55 = sphi 0, %s54
    %s71 = sphi 0, %s55
    %s75 = sphi 0, %s75
    %s77 = sphi 0, %s75
    %s78 = sphi 0, %s77
    %s92 = sphi 0, %s78
    %s96 = sphi 0, %s96
    %s98 = sphi 0, %s96
    %s99 = sphi 0, %s98
    %s113 = sphi 0, %s99
    %s117 = sphi 0, %s117
    %s119 = sphi 0, %s117
    %s120 = sphi 0, %s119
    %s134 = sphi 0, %s120
    %s138 = sphi 0, %s138
    %s140 = sphi 0, %s138
    %s141 = sphi 0, %s140
    %s155 = sphi 0, %s141
    %s159 = sphi 0, %s159
    %s161 = sphi 0, %s159
    %s162 = sphi 0, %s161
    %s176 = sphi 0, %s162
    %s180 = sphi 0, %s180
    %s182 = sphi 0, %s180
    %s183 = sphi 0, %s182
    %s197 = sphi 0, %s183
    %s201 = sphi 0, %s201
    %s203 = sphi 0, %s201
    %s204 = sphi 0, %s203
    %s218 = sphi 0, %s204
    %s224 = sphi 0, %s226
    %s227 = sphi 0, %s224
    %s228 = sphi 0, %s227
    %s244 = sphi 0, %s228
  $region4: #{tpu_custom_call.1} parent=0 // loop_header_branch
    %18 = sbr.rel (%p16) target = $region8
  $region5: #{tpu_custom_call.1} parent=0 // loop_body
    %s20 = ssub.s32 %s15, 1
    %s21 = ssub.s32 %s15, 2
    %s22 = sadd.s32 %s15, 1
    %s23 = ssub.s32 %s15, %s22
    %p24 = scmp.eq.s32.totalorder %s23, 0
    %s26 = sadd.s32 %s25, 1
    %s27 = scalar_select %p24, %s25, %s26
    %p30 = pneg %p24
    %p31 = scmp.eq.s32.totalorder %s15, 1
    %p32 = por %p30, %p31
    %p33 = scmp.ne.s32.totalorder %s25, %s28
    %p34 = scmp.eq.s32.totalorder %s15, 0
    %p35 = por %p33, %p34
    %p36 = scmp.ne.s32.totalorder %s25, %s28
    %p37 = scmp.eq.s32.totalorder %s20, 1
    %p38 = por %p36, %p37
    %p39 = scmp.ne.s32.totalorder %s28, %s29
    %p40 = scmp.eq.s32.totalorder %s20, 0
    %p41 = por %p39, %p40
    %p42 = scmp.ne.s32.totalorder %s28, %s29
    %p43 = scmp.eq.s32.totalorder %s21, 1
    %p44 = por %p42, %p43
    %p46 = scmp.ne.s32.totalorder %s29, %s45
    %p47 = scmp.eq.s32.totalorder %s21, 0
    %p48 = por %p46, %p47
    %s49 = ssub.s32 %s15, %s22
    %p50 = scmp.eq.s32.totalorder %s49, 0
    %s52 = sadd.s32 %s51, 1
    %s53 = scalar_select %p50, %s51, %s52
    %p56 = pneg %p50
    %p57 = scmp.eq.s32.totalorder %s15, 1
    %p58 = por %p56, %p57
    %p59 = scmp.ne.s32.totalorder %s51, %s54
    %p60 = scmp.eq.s32.totalorder %s15, 0
    %p61 = por %p59, %p60
    %p62 = scmp.ne.s32.totalorder %s51, %s54
    %p63 = scmp.eq.s32.totalorder %s20, 1
    %p64 = por %p62, %p63
    %p65 = scmp.ne.s32.totalorder %s54, %s55
    %p66 = scmp.eq.s32.totalorder %s20, 0
    %p67 = por %p65, %p66
    %p68 = scmp.ne.s32.totalorder %s54, %s55
    %p69 = scmp.eq.s32.totalorder %s21, 1
    %p70 = por %p68, %p69
    %p72 = scmp.ne.s32.totalorder %s55, %s71
    %p73 = scmp.eq.s32.totalorder %s21, 0
    %p74 = por %p72, %p73
    %s76 = sadd.s32 %s75, 1
    %p79 = scmp.eq.s32.totalorder %s15, 1
    %p80 = scmp.ne.s32.totalorder %s75, %s77
    %p81 = scmp.eq.s32.totalorder %s15, 0
    %p82 = por %p80, %p81
    %p83 = scmp.ne.s32.totalorder %s75, %s77
    %p84 = scmp.eq.s32.totalorder %s20, 1
    %p85 = por %p83, %p84
    %p86 = scmp.ne.s32.totalorder %s77, %s78
    %p87 = scmp.eq.s32.totalorder %s20, 0
    %p88 = por %p86, %p87
    %p89 = scmp.ne.s32.totalorder %s77, %s78
    %p90 = scmp.eq.s32.totalorder %s21, 1
    %p91 = por %p89, %p90
    %p93 = scmp.ne.s32.totalorder %s78, %s92
    %p94 = scmp.eq.s32.totalorder %s21, 0
    %p95 = por %p93, %p94
    %s97 = sadd.s32 %s96, 1
    %p100 = scmp.eq.s32.totalorder %s15, 1
    %p101 = scmp.ne.s32.totalorder %s96, %s98
    %p102 = scmp.eq.s32.totalorder %s15, 0
    %p103 = por %p101, %p102
    %p104 = scmp.ne.s32.totalorder %s96, %s98
    %p105 = scmp.eq.s32.totalorder %s20, 1
    %p106 = por %p104, %p105
    %p107 = scmp.ne.s32.totalorder %s98, %s99
    %p108 = scmp.eq.s32.totalorder %s20, 0
    %p109 = por %p107, %p108
    %p110 = scmp.ne.s32.totalorder %s98, %s99
    %p111 = scmp.eq.s32.totalorder %s21, 1
    %p112 = por %p110, %p111
    %p114 = scmp.ne.s32.totalorder %s99, %s113
    %p115 = scmp.eq.s32.totalorder %s21, 0
    %p116 = por %p114, %p115
    %s118 = sadd.s32 %s117, 1
    %p121 = scmp.eq.s32.totalorder %s15, 1
    %p122 = scmp.ne.s32.totalorder %s117, %s119
    %p123 = scmp.eq.s32.totalorder %s15, 0
    %p124 = por %p122, %p123
    %p125 = scmp.ne.s32.totalorder %s117, %s119
    %p126 = scmp.eq.s32.totalorder %s20, 1
    %p127 = por %p125, %p126
    %p128 = scmp.ne.s32.totalorder %s119, %s120
    %p129 = scmp.eq.s32.totalorder %s20, 0
    %p130 = por %p128, %p129
    %p131 = scmp.ne.s32.totalorder %s119, %s120
    %p132 = scmp.eq.s32.totalorder %s21, 1
    %p133 = por %p131, %p132
    %p135 = scmp.ne.s32.totalorder %s120, %s134
    %p136 = scmp.eq.s32.totalorder %s21, 0
    %p137 = por %p135, %p136
    %s139 = sadd.s32 %s138, 1
    %p142 = scmp.eq.s32.totalorder %s15, 1
    %p143 = scmp.ne.s32.totalorder %s138, %s140
    %p144 = scmp.eq.s32.totalorder %s15, 0
    %p145 = por %p143, %p144
    %p146 = scmp.ne.s32.totalorder %s138, %s140
    %p147 = scmp.eq.s32.totalorder %s20, 1
    %p148 = por %p146, %p147
    %p149 = scmp.ne.s32.totalorder %s140, %s141
    %p150 = scmp.eq.s32.totalorder %s20, 0
    %p151 = por %p149, %p150
    %p152 = scmp.ne.s32.totalorder %s140, %s141
    %p153 = scmp.eq.s32.totalorder %s21, 1
    %p154 = por %p152, %p153
    %p156 = scmp.ne.s32.totalorder %s141, %s155
    %p157 = scmp.eq.s32.totalorder %s21, 0
    %p158 = por %p156, %p157
    %s160 = sadd.s32 %s159, 1
    %p163 = scmp.eq.s32.totalorder %s15, 1
    %p164 = scmp.ne.s32.totalorder %s159, %s161
    %p165 = scmp.eq.s32.totalorder %s15, 0
    %p166 = por %p164, %p165
    %p167 = scmp.ne.s32.totalorder %s159, %s161
    %p168 = scmp.eq.s32.totalorder %s20, 1
    %p169 = por %p167, %p168
    %p170 = scmp.ne.s32.totalorder %s161, %s162
    %p171 = scmp.eq.s32.totalorder %s20, 0
    %p172 = por %p170, %p171
    %p173 = scmp.ne.s32.totalorder %s161, %s162
    %p174 = scmp.eq.s32.totalorder %s21, 1
    %p175 = por %p173, %p174
    %p177 = scmp.ne.s32.totalorder %s162, %s176
    %p178 = scmp.eq.s32.totalorder %s21, 0
    %p179 = por %p177, %p178
    %s181 = sadd.s32 %s180, 1
    %p184 = scmp.eq.s32.totalorder %s15, 1
    %p185 = scmp.ne.s32.totalorder %s180, %s182
    %p186 = scmp.eq.s32.totalorder %s15, 0
    %p187 = por %p185, %p186
    %p188 = scmp.ne.s32.totalorder %s180, %s182
    %p189 = scmp.eq.s32.totalorder %s20, 1
    %p190 = por %p188, %p189
    %p191 = scmp.ne.s32.totalorder %s182, %s183
    %p192 = scmp.eq.s32.totalorder %s20, 0
    %p193 = por %p191, %p192
    %p194 = scmp.ne.s32.totalorder %s182, %s183
    %p195 = scmp.eq.s32.totalorder %s21, 1
    %p196 = por %p194, %p195
    %p198 = scmp.ne.s32.totalorder %s183, %s197
    %p199 = scmp.eq.s32.totalorder %s21, 0
    %p200 = por %p198, %p199
    %s202 = sadd.s32 %s201, 1
    %p205 = scmp.eq.s32.totalorder %s15, 1
    %p206 = scmp.ne.s32.totalorder %s201, %s203
    %p207 = scmp.eq.s32.totalorder %s15, 0
    %p208 = por %p206, %p207
    %p209 = scmp.ne.s32.totalorder %s201, %s203
    %p210 = scmp.eq.s32.totalorder %s20, 1
    %p211 = por %p209, %p210
    %p212 = scmp.ne.s32.totalorder %s203, %s204
    %p213 = scmp.eq.s32.totalorder %s20, 0
    %p214 = por %p212, %p213
    %p215 = scmp.ne.s32.totalorder %s203, %s204
    %p216 = scmp.eq.s32.totalorder %s21, 1
    %p217 = por %p215, %p216
    %p219 = scmp.ne.s32.totalorder %s204, %s218
    %p220 = scmp.eq.s32.totalorder %s21, 0
    %p221 = por %p219, %p220
    %s222 = ssub.s32 %s15, %s22
    %p223 = scmp.eq.s32.totalorder %s222, 0
    %s225 = sadd.s32 %s224, 1
    %s226 = scalar_select %p223, %s224, %s225
    %p229 = pneg %p223
    %p230 = scmp.eq.s32.totalorder %s15, 1
    %p231 = por %p229, %p230
    %p232 = scmp.ne.s32.totalorder %s224, %s227
    %p233 = scmp.eq.s32.totalorder %s15, 0
    %p234 = por %p232, %p233
    %p235 = scmp.ne.s32.totalorder %s224, %s227
    %p236 = scmp.eq.s32.totalorder %s20, 1
    %p237 = por %p235, %p236
    %p238 = scmp.ne.s32.totalorder %s227, %s228
    %p239 = scmp.eq.s32.totalorder %s20, 0
    %p240 = por %p238, %p239
    %p241 = scmp.ne.s32.totalorder %s227, %s228
    %p242 = scmp.eq.s32.totalorder %s21, 1
    %p243 = por %p241, %p242
    %p245 = scmp.ne.s32.totalorder %s228, %s244
    %p246 = scmp.eq.s32.totalorder %s21, 0
    %p247 = por %p245, %p246
    %p248 = scmp.le.s32.totalorder 1, %s15
    %p249 = scmp.lt.s32.totalorder %s15, 3
    %p250 = pnand %p248, %p249
    %p251 = pneg %p250
    // Predicated region
    $region9: #{tpu_custom_call.1} parent=5 // pred_check
      _
    $region10: #{tpu_custom_call.1} parent=5 // pred_check_branch
      %253 = sbr.rel (%p250) target = $region12
    $region11: #{tpu_custom_call.1} parent=5 // pred_region
      %s254 = ssub.s32 %s15, 1
      // Predicated region
      $region13: #{tpu_custom_call.1} parent=11 // pred_check
        %p255 = pneg %p88
      $region14: #{tpu_custom_call.1} parent=11 // pred_check_branch
        %257 = sbr.rel (%p255) target = $region16
      $region15: #{tpu_custom_call.1} parent=11 // pred_region
        _
      $region16: #{tpu_custom_call.1} parent=11 // pred_fallthru
        _
      // Predicated region
      $region17: #{tpu_custom_call.1} parent=11 // pred_check
        %p258 = pneg %p109
      $region18: #{tpu_custom_call.1} parent=11 // pred_check_branch
        %260 = sbr.rel (%p258) target = $region20
      $region19: #{tpu_custom_call.1} parent=11 // pred_region
        _
      $region20: #{tpu_custom_call.1} parent=11 // pred_fallthru
        _
      // Predicated region
      $region21: #{tpu_custom_call.1} parent=11 // pred_check
        %p261 = pneg %p130
      $region22: #{tpu_custom_call.1} parent=11 // pred_check_branch
        %263 = sbr.rel (%p261) target = $region24
      $region23: #{tpu_custom_call.1} parent=11 // pred_region
        _
      $region24: #{tpu_custom_call.1} parent=11 // pred_fallthru
        _
      // Predicated region
      $region25: #{tpu_custom_call.1} parent=11 // pred_check
        %p264 = pneg %p151
      $region26: #{tpu_custom_call.1} parent=11 // pred_check_branch
        %266 = sbr.rel (%p264) target = $region28
      $region27: #{tpu_custom_call.1} parent=11 // pred_region
        _
      $region28: #{tpu_custom_call.1} parent=11 // pred_fallthru
        _
      // Predicated region
      $region29: #{tpu_custom_call.1} parent=11 // pred_check
        %p267 = pneg %p172
      $region30: #{tpu_custom_call.1} parent=11 // pred_check_branch
        %269 = sbr.rel (%p267) target = $region32
      $region31: #{tpu_custom_call.1} parent=11 // pred_region
        _
      $region32: #{tpu_custom_call.1} parent=11 // pred_fallthru
        _
      // Predicated region
      $region33: #{tpu_custom_call.1} parent=11 // pred_check
        %p270 = pneg %p193
      $region34: #{tpu_custom_call.1} parent=11 // pred_check_branch
        %272 = sbr.rel (%p270) target = $region36
      $region35: #{tpu_custom_call.1} parent=11 // pred_region
        _
      $region36: #{tpu_custom_call.1} parent=11 // pred_fallthru
        _
      // Predicated region
      $region37: #{tpu_custom_call.1} parent=11 // pred_check
        %p273 = pneg %p214
      $region38: #{tpu_custom_call.1} parent=11 // pred_check_branch
        %275 = sbr.rel (%p273) target = $region40
      $region39: #{tpu_custom_call.1} parent=11 // pred_region
        _
      $region40: #{tpu_custom_call.1} parent=11 // pred_fallthru
        _
    $region12: #{tpu_custom_call.1} parent=5 // pred_fallthru
      _
    %p276 = scmp.lt.s32.totalorder %s15, 2
    // Predicated region
    $region41: #{tpu_custom_call.1} parent=5 // pred_check
      %p277 = pneg %p276
    $region42: #{tpu_custom_call.1} parent=5 // pred_check_branch
      %279 = sbr.rel (%p277) target = $region44
    $region43: #{tpu_custom_call.1} parent=5 // pred_region
      // Predicated region
      $region45: #{tpu_custom_call.1} parent=43 // pred_check
        %p280 = pneg %p35
      $region46: #{tpu_custom_call.1} parent=43 // pred_check_branch
        %282 = sbr.rel (%p280) target = $region48
      $region47: #{tpu_custom_call.1} parent=43 // pred_region
        %s283 = smul.u32 16, %s15
        %p284 = scmp.lt.s32.totalorder %s283, 31
        %s285 = scalar_select %p284, %s283, 31
        %s286 = smul.addr %s285, 8
        %s287 = scalar_lea.vmem %s0, %s286
        %s288 = smul.u32 16, %s15
      $region48: #{tpu_custom_call.1} parent=43 // pred_fallthru
        _
      // Predicated region
      $region49: #{tpu_custom_call.1} parent=43 // pred_check
        %p289 = pneg %p61
      $region50: #{tpu_custom_call.1} parent=43 // pred_check_branch
        %291 = sbr.rel (%p289) target = $region52
      $region51: #{tpu_custom_call.1} parent=43 // pred_region
        %s292 = smul.u32 16, %s15
        %p293 = scmp.lt.s32.totalorder %s292, 31
        %s294 = scalar_select %p293, %s292, 31
        %s295 = smul.addr %s294, 8
        %s296 = scalar_lea.vmem %s1, %s295
        %s297 = smul.u32 16, %s15
      $region52: #{tpu_custom_call.1} parent=43 // pred_fallthru
        _
    $region44: #{tpu_custom_call.1} parent=5 // pred_fallthru
      _
    %p298 = scmp.le.s32.totalorder 1, %s15
    %p299 = scmp.lt.s32.totalorder %s15, 3
    %p300 = pnand %p298, %p299
    %p301 = pneg %p300
    // Predicated region
    $region53: #{tpu_custom_call.1} parent=5 // pred_check
      _
    $region54: #{tpu_custom_call.1} parent=5 // pred_check_branch
      %303 = sbr.rel (%p300) target = $region56
    $region55: #{tpu_custom_call.1} parent=5 // pred_region
      %s304 = ssub.s32 %s15, 1
      %s305 = smul.u32 16, %s20
      %p306 = scmp.lt.s32.totalorder %s305, 31
      %s307 = scalar_select %p306, %s305, 31
      %s308 = smul.addr %s307, 8
      %s309 = scalar_lea.vmem %s0, %s308
      %p310 = pneg %p41
      %p311 = pneg %p38
      %s312 = smul.u32 16, %s20
      %p313 = scmp.lt.s32.totalorder %s312, 31
      %s314 = scalar_select %p313, %s312, 31
      %s315 = smul.addr %s314, 8
      %s316 = scalar_lea.vmem %s1, %s315
      %p317 = pneg %p67
      %p318 = pneg %p64
      %p319 = pneg %p88
      %p320 = pneg %p85
      %p321 = pneg %p109
      %p322 = pneg %p106
      %p323 = pneg %p130
      %p324 = pneg %p127
      %p325 = pneg %p151
      %p326 = pneg %p148
      %p327 = pneg %p172
      %p328 = pneg %p169
      %p329 = pneg %p193
      %p330 = pneg %p190
      %p331 = pneg %p214
      %p332 = pneg %p211
      %p333 = pneg %p240
      %p334 = pneg %p237
      %s335 = smul.u32 16, %s20
      %p336 = scmp.lt.s32.totalorder %s335, 31
      %s337 = scalar_select %p336, %s335, 31
      %s338 = smul.addr %s337, 8
      %s339 = scalar_lea.vmem %s9, %s338
      %s340 = smul.u32 16, %s20
      %p341 = scmp.lt.s32.totalorder %s340, 31
      %s342 = scalar_select %p341, %s340, 31
      %s343 = smul.addr %s342, 8
      %s344 = scalar_lea.vmem %s0, %s343
      %s345 = smul.u32 16, %s20
      %s346 = smul.u32 16, %s20
      %p347 = scmp.lt.s32.totalorder %s346, 31
      %s348 = scalar_select %p347, %s346, 31
      %s349 = smul.addr %s348, 8
      %s350 = scalar_lea.vmem %s1, %s349
      %s351 = smul.u32 16, %s20
      %s352 = smul.u32 16, %s20
      %p353 = scmp.lt.s32.totalorder %s352, 31
      %s354 = scalar_select %p353, %s352, 31
      %s355 = smul.addr %s354, 8
      %s356 = scalar_lea.vmem %s9, %s355
      %s357 = smul.u32 16, %s20
      %v358 = vld [vmem:[%s344] sm:$0xff]
      %v359 = vld [vmem:[%s344 + $0x8] sm:$0xff]
      %v360 = vld [vmem:[%s344 + $0x10] sm:$0xff]
      %v361 = vld [vmem:[%s344 + $0x18] sm:$0xff]
      %v362 = vld [vmem:[%s344 + $0x20] sm:$0xff]
      %v363 = vld [vmem:[%s344 + $0x28] sm:$0xff]
      %v364 = vld [vmem:[%s344 + $0x30] sm:$0xff]
      %v365 = vld [vmem:[%s344 + $0x38] sm:$0xff]
      %v366 = vld [vmem:[%s344 + $0x40] sm:$0xff]
      %v367 = vld [vmem:[%s344 + $0x48] sm:$0xff]
      %v368 = vld [vmem:[%s344 + $0x50] sm:$0xff]
      %v369 = vld [vmem:[%s344 + $0x58] sm:$0xff]
      %v370 = vld [vmem:[%s344 + $0x60] sm:$0xff]
      %v371 = vld [vmem:[%s344 + $0x68] sm:$0xff]
      %v372 = vld [vmem:[%s344 + $0x70] sm:$0xff]
      %v373 = vld [vmem:[%s344 + $0x78] sm:$0xff]
      %v374 = vld [vmem:[%s2] sm:$0xf]
      %v375 = vld [vmem:[%s350] sm:$0xff]
      %v376 = vld [vmem:[%s350 + $0x8] sm:$0xff]
      %v377 = vld [vmem:[%s350 + $0x10] sm:$0xff]
      %v378 = vld [vmem:[%s350 + $0x18] sm:$0xff]
      %v379 = vld [vmem:[%s350 + $0x20] sm:$0xff]
      %v380 = vld [vmem:[%s350 + $0x28] sm:$0xff]
      %v381 = vld [vmem:[%s350 + $0x30] sm:$0xff]
      %v382 = vld [vmem:[%s350 + $0x38] sm:$0xff]
      %v383 = vld [vmem:[%s350 + $0x40] sm:$0xff]
      %v384 = vld [vmem:[%s350 + $0x48] sm:$0xff]
      %v385 = vld [vmem:[%s350 + $0x50] sm:$0xff]
      %v386 = vld [vmem:[%s350 + $0x58] sm:$0xff]
      %v387 = vld [vmem:[%s350 + $0x60] sm:$0xff]
      %v388 = vld [vmem:[%s350 + $0x68] sm:$0xff]
      %v389 = vld [vmem:[%s350 + $0x70] sm:$0xff]
      %v390 = vld [vmem:[%s350 + $0x78] sm:$0xff]
      %v391 = vld [vmem:[%s3] sm:$0x1]
      %393 = vset.pattern.permute.xlu0 0
      %394 = vperm.xlu0 %393, %v375
      %v395 = vpop.permute.xlu0 %394
      %398 = vset.pattern.permute.xlu0 0
      %399 = vperm.xlu0 %398, %v376
      %v400 = vpop.permute.xlu0 %399
      %403 = vset.pattern.permute.xlu0 0
      %404 = vperm.xlu0 %403, %v377
      %v405 = vpop.permute.xlu0 %404
      %408 = vset.pattern.permute.xlu0 0
      %409 = vperm.xlu0 %408, %v378
      %v410 = vpop.permute.xlu0 %409
      %413 = vset.pattern.permute.xlu0 0
      %414 = vperm.xlu0 %413, %v379
      %v415 = vpop.permute.xlu0 %414
      %418 = vset.pattern.permute.xlu0 0
      %419 = vperm.xlu0 %418, %v380
      %v420 = vpop.permute.xlu0 %419
      %423 = vset.pattern.permute.xlu0 0
      %424 = vperm.xlu0 %423, %v381
      %v425 = vpop.permute.xlu0 %424
      %428 = vset.pattern.permute.xlu0 0
      %429 = vperm.xlu0 %428, %v382
      %v430 = vpop.permute.xlu0 %429
      %433 = vset.pattern.permute.xlu0 0
      %434 = vperm.xlu0 %433, %v383
      %v435 = vpop.permute.xlu0 %434
      %438 = vset.pattern.permute.xlu0 0
      %439 = vperm.xlu0 %438, %v384
      %v440 = vpop.permute.xlu0 %439
      %443 = vset.pattern.permute.xlu0 0
      %444 = vperm.xlu0 %443, %v385
      %v445 = vpop.permute.xlu0 %444
      %448 = vset.pattern.permute.xlu0 0
      %449 = vperm.xlu0 %448, %v386
      %v450 = vpop.permute.xlu0 %449
      %453 = vset.pattern.permute.xlu0 0
      %454 = vperm.xlu0 %453, %v387
      %v455 = vpop.permute.xlu0 %454
      %458 = vset.pattern.permute.xlu0 0
      %459 = vperm.xlu0 %458, %v388
      %v460 = vpop.permute.xlu0 %459
      %463 = vset.pattern.permute.xlu0 0
      %464 = vperm.xlu0 %463, %v389
      %v465 = vpop.permute.xlu0 %464
      %468 = vset.pattern.permute.xlu0 0
      %469 = vperm.xlu0 %468, %v390
      %v470 = vpop.permute.xlu0 %469
      %v473 = vperm.slane %v391, 0
      %v475 = vmul.f32 %v395, %v473
      %v476 = vmul.f32 %v400, %v473
      %v477 = vmul.f32 %v405, %v473
      %v478 = vmul.f32 %v410, %v473
      %v479 = vmul.f32 %v415, %v473
      %v480 = vmul.f32 %v420, %v473
      %v481 = vmul.f32 %v425, %v473
      %v482 = vmul.f32 %v430, %v473
      %v483 = vmul.f32 %v435, %v473
      %v484 = vmul.f32 %v440, %v473
      %v485 = vmul.f32 %v445, %v473
      %v486 = vmul.f32 %v450, %v473
      %v487 = vmul.f32 %v455, %v473
      %v488 = vmul.f32 %v460, %v473
      %v489 = vmul.f32 %v465, %v473
      %v490 = vmul.f32 %v470, %v473
      %vm491 = vcmask 31744
      %v493 = vsel %vm491, %v358, 0
      %v496 = vsel %vm491, %v359, 0
      %v499 = vsel %vm491, %v360, 0
      %v502 = vsel %vm491, %v361, 0
      %v505 = vsel %vm491, %v362, 0
      %v508 = vsel %vm491, %v363, 0
      %v511 = vsel %vm491, %v364, 0
      %v514 = vsel %vm491, %v365, 0
      %v517 = vsel %vm491, %v366, 0
      %v520 = vsel %vm491, %v367, 0
      %v523 = vsel %vm491, %v368, 0
      %v526 = vsel %vm491, %v369, 0
      %v529 = vsel %vm491, %v370, 0
      %v532 = vsel %vm491, %v371, 0
      %v535 = vsel %vm491, %v372, 0
      %v538 = vsel %vm491, %v373, 0
      %vm540 = vcmask 1043456
      %v542 = vsel %vm540, %v374, 0
      %544 = vmatpush.msra.mxu0 0.0
      %545 = vmatpush.msra.mxu0 0.0
      %546 = vmatpush.msra.mxu0 0.0
      %547 = vmatpush.msra.mxu0 0.0
      %548 = vmatpush.msra.mxu0 0.0
      %549 = vmatpush.msra.mxu0 0.0
      %550 = vmatpush.msra.mxu0 0.0
      %551 = vmatpush.msra.mxu0 0.0
      %552 = vmatpush.msra.mxu0 0.0
      %553 = vmatpush.msra.mxu0 0.0
      %554 = vmatpush.msra.mxu0 0.0
      %555 = vmatpush.msra.mxu0 0.0
      %556 = vmatpush.msra.mxu0 0.0
      %557 = vmatpush.msra.mxu0 0.0
      %558 = vmatpush.msra.mxu0 0.0
      %559 = vmatpush.msra.mxu0 %v542
      %560 = vmatmul.f32.gmra.mxu0 %v493
      %v561 = vpop.f32.mrf.mxu0
      %v562 = vadd.f32 %v475, %v561
      %563 = vmatmul.f32.gmra.mxu0 %v496
      %v564 = vpop.f32.mrf.mxu0
      %v565 = vadd.f32 %v476, %v564
      %566 = vmatmul.f32.gmra.mxu0 %v499
      %v567 = vpop.f32.mrf.mxu0
      %v568 = vadd.f32 %v477, %v567
      %569 = vmatmul.f32.gmra.mxu0 %v502
      %v570 = vpop.f32.mrf.mxu0
      %v571 = vadd.f32 %v478, %v570
      %572 = vmatmul.f32.gmra.mxu0 %v505
      %v573 = vpop.f32.mrf.mxu0
      %v574 = vadd.f32 %v479, %v573
      %575 = vmatmul.f32.gmra.mxu0 %v508
      %v576 = vpop.f32.mrf.mxu0
      %v577 = vadd.f32 %v480, %v576
      %578 = vmatmul.f32.gmra.mxu0 %v511
      %v579 = vpop.f32.mrf.mxu0
      %v580 = vadd.f32 %v481, %v579
      %581 = vmatmul.f32.gmra.mxu0 %v514
      %v582 = vpop.f32.mrf.mxu0
      %v583 = vadd.f32 %v482, %v582
      %584 = vmatmul.f32.gmra.mxu0 %v517
      %v585 = vpop.f32.mrf.mxu0
      %v586 = vadd.f32 %v483, %v585
      %587 = vmatmul.f32.gmra.mxu0 %v520
      %v588 = vpop.f32.mrf.mxu0
      %v589 = vadd.f32 %v484, %v588
      %590 = vmatmul.f32.gmra.mxu0 %v523
      %v591 = vpop.f32.mrf.mxu0
      %v592 = vadd.f32 %v485, %v591
      %593 = vmatmul.f32.gmra.mxu0 %v526
      %v594 = vpop.f32.mrf.mxu0
      %v595 = vadd.f32 %v486, %v594
      %596 = vmatmul.f32.gmra.mxu0 %v529
      %v597 = vpop.f32.mrf.mxu0
      %v598 = vadd.f32 %v487, %v597
      %599 = vmatmul.f32.gmra.mxu0 %v532
      %v600 = vpop.f32.mrf.mxu0
      %v601 = vadd.f32 %v488, %v600
      %602 = vmatmul.f32.gmra.mxu0 %v535
      %v603 = vpop.f32.mrf.mxu0
      %v604 = vadd.f32 %v489, %v603
      %605 = vmatmul.f32.gmra.mxu0 %v538
      %v606 = vpop.f32.mrf.mxu0
      %v607 = vadd.f32 %v490, %v606
      %608 = vdwg.mxu0
      %v609 = vld [vmem:[%s4] sm:$0x1]
      %v611 = vperm.slane %v609, 0
      %v613 = vadd.f32 %v562, %v611
      %v614 = vadd.f32 %v565, %v611
      %v615 = vadd.f32 %v568, %v611
      %v616 = vadd.f32 %v571, %v611
      %v617 = vadd.f32 %v574, %v611
      %v618 = vadd.f32 %v577, %v611
      %v619 = vadd.f32 %v580, %v611
      %v620 = vadd.f32 %v583, %v611
      %v621 = vadd.f32 %v586, %v611
      %v622 = vadd.f32 %v589, %v611
      %v623 = vadd.f32 %v592, %v611
      %v624 = vadd.f32 %v595, %v611
      %v625 = vadd.f32 %v598, %v611
      %v626 = vadd.f32 %v601, %v611
      %v627 = vadd.f32 %v604, %v611
      %v628 = vadd.f32 %v607, %v611
      %vm629 = vcmp.gt.f32.partialorder %v613, 0.0
      %vm630 = vcmp.gt.f32.partialorder %v614, 0.0
      %vm631 = vcmp.gt.f32.partialorder %v615, 0.0
      %vm632 = vcmp.gt.f32.partialorder %v616, 0.0
      %vm633 = vcmp.gt.f32.partialorder %v617, 0.0
      %vm634 = vcmp.gt.f32.partialorder %v618, 0.0
      %vm635 = vcmp.gt.f32.partialorder %v619, 0.0
      %vm636 = vcmp.gt.f32.partialorder %v620, 0.0
      %vm637 = vcmp.gt.f32.partialorder %v621, 0.0
      %vm638 = vcmp.gt.f32.partialorder %v622, 0.0
      %vm639 = vcmp.gt.f32.partialorder %v623, 0.0
      %vm640 = vcmp.gt.f32.partialorder %v624, 0.0
      %vm641 = vcmp.gt.f32.partialorder %v625, 0.0
      %vm642 = vcmp.gt.f32.partialorder %v626, 0.0
      %vm643 = vcmp.gt.f32.partialorder %v627, 0.0
      %vm644 = vcmp.gt.f32.partialorder %v628, 0.0
      %v645 = vmul.f32 %v613, 1.442695
      %v646 = vpow.pop %v645
      %v647 = vmul.f32 %v614, 1.442695
      %v648 = vpow.pop %v647
      %v649 = vmul.f32 %v615, 1.442695
      %v650 = vpow.pop %v649
      %v651 = vmul.f32 %v616, 1.442695
      %v652 = vpow.pop %v651
      %v653 = vmul.f32 %v617, 1.442695
      %v654 = vpow.pop %v653
      %v655 = vmul.f32 %v618, 1.442695
      %v656 = vpow.pop %v655
      %v657 = vmul.f32 %v619, 1.442695
      %v658 = vpow.pop %v657
      %v659 = vmul.f32 %v620, 1.442695
      %v660 = vpow.pop %v659
      %v661 = vmul.f32 %v621, 1.442695
      %v662 = vpow.pop %v661
      %v663 = vmul.f32 %v622, 1.442695
      %v664 = vpow.pop %v663
      %v665 = vmul.f32 %v623, 1.442695
      %v666 = vpow.pop %v665
      %v667 = vmul.f32 %v624, 1.442695
      %v668 = vpow.pop %v667
      %v669 = vmul.f32 %v625, 1.442695
      %v670 = vpow.pop %v669
      %v671 = vmul.f32 %v626, 1.442695
      %v672 = vpow.pop %v671
      %v673 = vmul.f32 %v627, 1.442695
      %v674 = vpow.pop %v673
      %v675 = vmul.f32 %v628, 1.442695
      %v676 = vpow.pop %v675
      %v677 = vsub.f32 %v646, 1.0
      %v678 = vsub.f32 %v648, 1.0
      %v679 = vsub.f32 %v650, 1.0
      %v680 = vsub.f32 %v652, 1.0
      %v681 = vsub.f32 %v654, 1.0
      %v682 = vsub.f32 %v656, 1.0
      %v683 = vsub.f32 %v658, 1.0
      %v684 = vsub.f32 %v660, 1.0
      %v685 = vsub.f32 %v662, 1.0
      %v686 = vsub.f32 %v664, 1.0
      %v687 = vsub.f32 %v666, 1.0
      %v688 = vsub.f32 %v668, 1.0
      %v689 = vsub.f32 %v670, 1.0
      %v690 = vsub.f32 %v672, 1.0
      %v691 = vsub.f32 %v674, 1.0
      %v692 = vsub.f32 %v676, 1.0
      %v693 = vsel %vm629, %v613, %v677
      %v694 = vsel %vm630, %v614, %v678
      %v695 = vsel %vm631, %v615, %v679
      %v696 = vsel %vm632, %v616, %v680
      %v697 = vsel %vm633, %v617, %v681
      %v698 = vsel %vm634, %v618, %v682
      %v699 = vsel %vm635, %v619, %v683
      %v700 = vsel %vm636, %v620, %v684
      %v701 = vsel %vm637, %v621, %v685
      %v702 = vsel %vm638, %v622, %v686
      %v703 = vsel %vm639, %v623, %v687
      %v704 = vsel %vm640, %v624, %v688
      %v705 = vsel %vm641, %v625, %v689
      %v706 = vsel %vm642, %v626, %v690
      %v707 = vsel %vm643, %v627, %v691
      %v708 = vsel %vm644, %v628, %v692
      %v709 = vpack.c.bf16 %v694, %v693
      %v710 = vpack.c.bf16 %v696, %v695
      %v711 = vpack.c.bf16 %v698, %v697
      %v712 = vpack.c.bf16 %v700, %v699
      %v713 = vpack.c.bf16 %v702, %v701
      %v714 = vpack.c.bf16 %v704, %v703
      %v715 = vpack.c.bf16 %v706, %v705
      %v716 = vpack.c.bf16 %v708, %v707
      %v717 = vld [vmem:[%s5] sm:$0xf]
      %v718 = vld [vmem:[%s5 + $0x4] sm:$0xf]
      %v719 = vld [vmem:[%s5 + $0x8] sm:$0xf]
      %v720 = vld [vmem:[%s5 + $0xc] sm:$0xf]
      %v721 = vld [vmem:[%s5 + $0x10] sm:$0xf]
      %v722 = vld [vmem:[%s5 + $0x14] sm:$0xf]
      %v723 = vld [vmem:[%s5 + $0x18] sm:$0xf]
      %v724 = vld [vmem:[%s5 + $0x1c] sm:$0xf]
      %v725 = vld [vmem:[%s5 + $0x20] sm:$0xf]
      %v726 = vld [vmem:[%s5 + $0x24] sm:$0xf]
      %v727 = vld [vmem:[%s5 + $0x28] sm:$0xf]
      %v728 = vld [vmem:[%s5 + $0x2c] sm:$0xf]
      %v729 = vld [vmem:[%s5 + $0x30] sm:$0xf]
      %v730 = vld [vmem:[%s5 + $0x34] sm:$0xf]
      %v731 = vld [vmem:[%s5 + $0x38] sm:$0xf]
      %v732 = vld [vmem:[%s5 + $0x3c] sm:$0xf]
      %v733 = vld [vmem:[%s6] sm:$0x1]
      %v735 = vperm.slane %v733, 0
      %v753 = vunpack.c.l.b16 %v717
      %v754 = vunpack.c.l.b16 %v718
      %v755 = vunpack.c.l.b16 %v719
      %v756 = vunpack.c.l.b16 %v720
      %v757 = vunpack.c.l.b16 %v721
      %v758 = vunpack.c.l.b16 %v722
      %v759 = vunpack.c.l.b16 %v723
      %v760 = vunpack.c.l.b16 %v724
      %v761 = vunpack.c.l.b16 %v725
      %v762 = vunpack.c.l.b16 %v726
      %v763 = vunpack.c.l.b16 %v727
      %v764 = vunpack.c.l.b16 %v728
      %v765 = vunpack.c.l.b16 %v729
      %v766 = vunpack.c.l.b16 %v730
      %v767 = vunpack.c.l.b16 %v731
      %v768 = vunpack.c.l.b16 %v732
      %v769 = vpack.c.b16 %v754, %v753
      %v770 = vpack.c.b16 %v756, %v755
      %v771 = vpack.c.b16 %v758, %v757
      %v772 = vpack.c.b16 %v760, %v759
      %v773 = vpack.c.b16 %v762, %v761
      %v774 = vpack.c.b16 %v764, %v763
      %v775 = vpack.c.b16 %v766, %v765
      %v776 = vpack.c.b16 %v768, %v767
      %785 = vmatpush.bf16.msra.mxu0 %v776
      %786 = vmatpush.bf16.msra.mxu0 %v775
      %787 = vmatpush.bf16.msra.mxu0 %v774
      %788 = vmatpush.bf16.msra.mxu0 %v773
      %789 = vmatpush.bf16.msra.mxu0 %v772
      %790 = vmatpush.bf16.msra.mxu0 %v771
      %791 = vmatpush.bf16.msra.mxu0 %v770
      %792 = vmatpush.bf16.msra.mxu0 %v769
      %793 = vmatmul.bf16.gmra.mxu0 %v709
      %v794 = vpop.f32.mrf.mxu0
      %v795 = vadd.f32 %v735, %v794
      %v796 = vpop.f32.mrf.mxu0
      %v797 = vadd.f32 %v735, %v796
      %798 = vmatmul.bf16.gmra.mxu0 %v710
      %v799 = vpop.f32.mrf.mxu0
      %v800 = vadd.f32 %v735, %v799
      %v801 = vpop.f32.mrf.mxu0
      %v802 = vadd.f32 %v735, %v801
      %803 = vmatmul.bf16.gmra.mxu0 %v711
      %v804 = vpop.f32.mrf.mxu0
      %v805 = vadd.f32 %v735, %v804
      %v806 = vpop.f32.mrf.mxu0
      %v807 = vadd.f32 %v735, %v806
      %808 = vmatmul.bf16.gmra.mxu0 %v712
      %v809 = vpop.f32.mrf.mxu0
      %v810 = vadd.f32 %v735, %v809
      %v811 = vpop.f32.mrf.mxu0
      %v812 = vadd.f32 %v735, %v811
      %813 = vmatmul.bf16.gmra.mxu0 %v713
      %v814 = vpop.f32.mrf.mxu0
      %v815 = vadd.f32 %v735, %v814
      %v816 = vpop.f32.mrf.mxu0
      %v817 = vadd.f32 %v735, %v816
      %818 = vmatmul.bf16.gmra.mxu0 %v714
      %v819 = vpop.f32.mrf.mxu0
      %v820 = vadd.f32 %v735, %v819
      %v821 = vpop.f32.mrf.mxu0
      %v822 = vadd.f32 %v735, %v821
      %823 = vmatmul.bf16.gmra.mxu0 %v715
      %v824 = vpop.f32.mrf.mxu0
      %v825 = vadd.f32 %v735, %v824
      %v826 = vpop.f32.mrf.mxu0
      %v827 = vadd.f32 %v735, %v826
      %828 = vmatmul.bf16.gmra.mxu0 %v716
      %v829 = vpop.f32.mrf.mxu0
      %v830 = vadd.f32 %v735, %v829
      %v831 = vpop.f32.mrf.mxu0
      %v832 = vadd.f32 %v735, %v831
      %833 = vdwg.mxu0
      %vm834 = vcmp.gt.f32.partialorder %v795, 0.0
      %vm835 = vcmp.gt.f32.partialorder %v797, 0.0
      %vm836 = vcmp.gt.f32.partialorder %v800, 0.0
      %vm837 = vcmp.gt.f32.partialorder %v802, 0.0
      %vm838 = vcmp.gt.f32.partialorder %v805, 0.0
      %vm839 = vcmp.gt.f32.partialorder %v807, 0.0
      %vm840 = vcmp.gt.f32.partialorder %v810, 0.0
      %vm841 = vcmp.gt.f32.partialorder %v812, 0.0
      %vm842 = vcmp.gt.f32.partialorder %v815, 0.0
      %vm843 = vcmp.gt.f32.partialorder %v817, 0.0
      %vm844 = vcmp.gt.f32.partialorder %v820, 0.0
      %vm845 = vcmp.gt.f32.partialorder %v822, 0.0
      %vm846 = vcmp.gt.f32.partialorder %v825, 0.0
      %vm847 = vcmp.gt.f32.partialorder %v827, 0.0
      %vm848 = vcmp.gt.f32.partialorder %v830, 0.0
      %vm849 = vcmp.gt.f32.partialorder %v832, 0.0
      %v850 = vmul.f32 %v795, 1.442695
      %v851 = vpow.pop %v850
      %v852 = vmul.f32 %v797, 1.442695
      %v853 = vpow.pop %v852
      %v854 = vmul.f32 %v800, 1.442695
      %v855 = vpow.pop %v854
      %v856 = vmul.f32 %v802, 1.442695
      %v857 = vpow.pop %v856
      %v858 = vmul.f32 %v805, 1.442695
      %v859 = vpow.pop %v858
      %v860 = vmul.f32 %v807, 1.442695
      %v861 = vpow.pop %v860
      %v862 = vmul.f32 %v810, 1.442695
      %v863 = vpow.pop %v862
      %v864 = vmul.f32 %v812, 1.442695
      %v865 = vpow.pop %v864
      %v866 = vmul.f32 %v815, 1.442695
      %v867 = vpow.pop %v866
      %v868 = vmul.f32 %v817, 1.442695
      %v869 = vpow.pop %v868
      %v870 = vmul.f32 %v820, 1.442695
      %v871 = vpow.pop %v870
      %v872 = vmul.f32 %v822, 1.442695
      %v873 = vpow.pop %v872
      %v874 = vmul.f32 %v825, 1.442695
      %v875 = vpow.pop %v874
      %v876 = vmul.f32 %v827, 1.442695
      %v877 = vpow.pop %v876
      %v878 = vmul.f32 %v830, 1.442695
      %v879 = vpow.pop %v878
      %v880 = vmul.f32 %v832, 1.442695
      %v881 = vpow.pop %v880
      %v882 = vsub.f32 %v851, 1.0
      %v883 = vsub.f32 %v853, 1.0
      %v884 = vsub.f32 %v855, 1.0
      %v885 = vsub.f32 %v857, 1.0
      %v886 = vsub.f32 %v859, 1.0
      %v887 = vsub.f32 %v861, 1.0
      %v888 = vsub.f32 %v863, 1.0
      %v889 = vsub.f32 %v865, 1.0
      %v890 = vsub.f32 %v867, 1.0
      %v891 = vsub.f32 %v869, 1.0
      %v892 = vsub.f32 %v871, 1.0
      %v893 = vsub.f32 %v873, 1.0
      %v894 = vsub.f32 %v875, 1.0
      %v895 = vsub.f32 %v877, 1.0
      %v896 = vsub.f32 %v879, 1.0
      %v897 = vsub.f32 %v881, 1.0
      %v898 = vsel %vm834, %v795, %v882
      %v899 = vsel %vm835, %v797, %v883
      %v900 = vsel %vm836, %v800, %v884
      %v901 = vsel %vm837, %v802, %v885
      %v902 = vsel %vm838, %v805, %v886
      %v903 = vsel %vm839, %v807, %v887
      %v904 = vsel %vm840, %v810, %v888
      %v905 = vsel %vm841, %v812, %v889
      %v906 = vsel %vm842, %v815, %v890
      %v907 = vsel %vm843, %v817, %v891
      %v908 = vsel %vm844, %v820, %v892
      %v909 = vsel %vm845, %v822, %v893
      %v910 = vsel %vm846, %v825, %v894
      %v911 = vsel %vm847, %v827, %v895
      %v912 = vsel %vm848, %v830, %v896
      %v913 = vsel %vm849, %v832, %v897
      %v914 = vpack.c.bf16 %v899, %v898
      %v915 = vpack.c.bf16 %v901, %v900
      %v916 = vpack.c.bf16 %v903, %v902
      %v917 = vpack.c.bf16 %v905, %v904
      %v918 = vpack.c.bf16 %v907, %v906
      %v919 = vpack.c.bf16 %v909, %v908
      %v920 = vpack.c.bf16 %v911, %v910
      %v921 = vpack.c.bf16 %v913, %v912
      %v922 = vld [vmem:[%s7] sm:$0xf]
      %v923 = vld [vmem:[%s7 + $0x4] sm:$0xf]
      %v924 = vld [vmem:[%s7 + $0x8] sm:$0xf]
      %v925 = vld [vmem:[%s7 + $0xc] sm:$0xf]
      %v926 = vld [vmem:[%s7 + $0x10] sm:$0xf]
      %v927 = vld [vmem:[%s7 + $0x14] sm:$0xf]
      %v928 = vld [vmem:[%s7 + $0x18] sm:$0xf]
      %v929 = vld [vmem:[%s7 + $0x1c] sm:$0xf]
      %v930 = vld [vmem:[%s7 + $0x20] sm:$0xf]
      %v931 = vld [vmem:[%s7 + $0x24] sm:$0xf]
      %v932 = vld [vmem:[%s7 + $0x28] sm:$0xf]
      %v933 = vld [vmem:[%s7 + $0x2c] sm:$0xf]
      %v934 = vld [vmem:[%s7 + $0x30] sm:$0xf]
      %v935 = vld [vmem:[%s7 + $0x34] sm:$0xf]
      %v936 = vld [vmem:[%s7 + $0x38] sm:$0xf]
      %v937 = vld [vmem:[%s7 + $0x3c] sm:$0xf]
      %v938 = vld [vmem:[%s8] sm:$0x1]
      %v940 = vperm.slane %v938, 0
      %v958 = vunpack.c.l.b16 %v922
      %v959 = vunpack.c.l.b16 %v923
      %v960 = vunpack.c.l.b16 %v924
      %v961 = vunpack.c.l.b16 %v925
      %v962 = vunpack.c.l.b16 %v926
      %v963 = vunpack.c.l.b16 %v927
      %v964 = vunpack.c.l.b16 %v928
      %v965 = vunpack.c.l.b16 %v929
      %v966 = vunpack.c.l.b16 %v930
      %v967 = vunpack.c.l.b16 %v931
      %v968 = vunpack.c.l.b16 %v932
      %v969 = vunpack.c.l.b16 %v933
      %v970 = vunpack.c.l.b16 %v934
      %v971 = vunpack.c.l.b16 %v935
      %v972 = vunpack.c.l.b16 %v936
      %v973 = vunpack.c.l.b16 %v937
      %v974 = vpack.c.b16 %v959, %v958
      %v975 = vpack.c.b16 %v961, %v960
      %v976 = vpack.c.b16 %v963, %v962
      %v977 = vpack.c.b16 %v965, %v964
      %v978 = vpack.c.b16 %v967, %v966
      %v979 = vpack.c.b16 %v969, %v968
      %v980 = vpack.c.b16 %v971, %v970
      %v981 = vpack.c.b16 %v973, %v972
      %990 = vmatpush.bf16.msra.mxu0 %v981
      %991 = vmatpush.bf16.msra.mxu0 %v980
      %992 = vmatpush.bf16.msra.mxu0 %v979
      %993 = vmatpush.bf16.msra.mxu0 %v978
      %994 = vmatpush.bf16.msra.mxu0 %v977
      %995 = vmatpush.bf16.msra.mxu0 %v976
      %996 = vmatpush.bf16.msra.mxu0 %v975
      %997 = vmatpush.bf16.msra.mxu0 %v974
      %998 = vmatmul.bf16.gmra.mxu0 %v914
      %v999 = vpop.f32.mrf.mxu0
      %v1000 = vadd.f32 %v940, %v999
      %v1001 = vpop.f32.mrf.mxu0
      %v1002 = vadd.f32 %v940, %v1001
      %1003 = vmatmul.bf16.gmra.mxu0 %v915
      %v1004 = vpop.f32.mrf.mxu0
      %v1005 = vadd.f32 %v940, %v1004
      %v1006 = vpop.f32.mrf.mxu0
      %v1007 = vadd.f32 %v940, %v1006
      %1008 = vmatmul.bf16.gmra.mxu0 %v916
      %v1009 = vpop.f32.mrf.mxu0
      %v1010 = vadd.f32 %v940, %v1009
      %v1011 = vpop.f32.mrf.mxu0
      %v1012 = vadd.f32 %v940, %v1011
      %1013 = vmatmul.bf16.gmra.mxu0 %v917
      %v1014 = vpop.f32.mrf.mxu0
      %v1015 = vadd.f32 %v940, %v1014
      %v1016 = vpop.f32.mrf.mxu0
      %v1017 = vadd.f32 %v940, %v1016
      %1018 = vmatmul.bf16.gmra.mxu0 %v918
      %v1019 = vpop.f32.mrf.mxu0
      %v1020 = vadd.f32 %v940, %v1019
      %v1021 = vpop.f32.mrf.mxu0
      %v1022 = vadd.f32 %v940, %v1021
      %1023 = vmatmul.bf16.gmra.mxu0 %v919
      %v1024 = vpop.f32.mrf.mxu0
      %v1025 = vadd.f32 %v940, %v1024
      %v1026 = vpop.f32.mrf.mxu0
      %v1027 = vadd.f32 %v940, %v1026
      %1028 = vmatmul.bf16.gmra.mxu0 %v920
      %v1029 = vpop.f32.mrf.mxu0
      %v1030 = vadd.f32 %v940, %v1029
      %v1031 = vpop.f32.mrf.mxu0
      %v1032 = vadd.f32 %v940, %v1031
      %1033 = vmatmul.bf16.gmra.mxu0 %v921
      %v1034 = vpop.f32.mrf.mxu0
      %v1035 = vadd.f32 %v940, %v1034
      %v1036 = vpop.f32.mrf.mxu0
      %v1037 = vadd.f32 %v940, %v1036
      %1038 = vdwg.mxu0
      %1039 = vst.msk [vmem:[%s356] sm:$0xff] %vm491, %v1000
      %1040 = vst.msk [vmem:[%s356 + $0x8] sm:$0xff] %vm491, %v1002
      %1041 = vst.msk [vmem:[%s356 + $0x10] sm:$0xff] %vm491, %v1005
      %1042 = vst.msk [vmem:[%s356 + $0x18] sm:$0xff] %vm491, %v1007
      %1043 = vst.msk [vmem:[%s356 + $0x20] sm:$0xff] %vm491, %v1010
      %1044 = vst.msk [vmem:[%s356 + $0x28] sm:$0xff] %vm491, %v1012
      %1045 = vst.msk [vmem:[%s356 + $0x30] sm:$0xff] %vm491, %v1015
      %1046 = vst.msk [vmem:[%s356 + $0x38] sm:$0xff] %vm491, %v1017
      %1047 = vst.msk [vmem:[%s356 + $0x40] sm:$0xff] %vm491, %v1020
      %1048 = vst.msk [vmem:[%s356 + $0x48] sm:$0xff] %vm491, %v1022
      %1049 = vst.msk [vmem:[%s356 + $0x50] sm:$0xff] %vm491, %v1025
      %1050 = vst.msk [vmem:[%s356 + $0x58] sm:$0xff] %vm491, %v1027
      %1051 = vst.msk [vmem:[%s356 + $0x60] sm:$0xff] %vm491, %v1030
      %1052 = vst.msk [vmem:[%s356 + $0x68] sm:$0xff] %vm491, %v1032
      %1053 = vst.msk [vmem:[%s356 + $0x70] sm:$0xff] %vm491, %v1035
      %1054 = vst.msk [vmem:[%s356 + $0x78] sm:$0xff] %vm491, %v1037
      %s1055 = smul.u32 16, %s20
      %p1056 = scmp.lt.s32.totalorder %s1055, 31
      %s1057 = scalar_select %p1056, %s1055, 31
      %s1058 = smul.addr %s1057, 8
      %s1059 = scalar_lea.vmem %s9, %s1058
      // Predicated region
      $region57: #{tpu_custom_call.1} parent=55 // pred_check
        %p1060 = pneg %p237
      $region58: #{tpu_custom_call.1} parent=55 // pred_check_branch
        %1062 = sbr.rel (%p1060) target = $region60
      $region59: #{tpu_custom_call.1} parent=55 // pred_region
        %s1063 = smul.u32 16, %s20
      $region60: #{tpu_custom_call.1} parent=55 // pred_fallthru
        _
    $region56: #{tpu_custom_call.1} parent=5 // pred_fallthru
      _
    %p1064 = scmp.le.s32.totalorder 2, %s15
    // Predicated region
    $region61: #{tpu_custom_call.1} parent=5 // pred_check
      %p1065 = pneg %p1064
    $region62: #{tpu_custom_call.1} parent=5 // pred_check_branch
      %1067 = sbr.rel (%p1065) target = $region64
    $region63: #{tpu_custom_call.1} parent=5 // pred_region
      %s1068 = ssub.s32 %s15, 2
      // Predicated region
      $region65: #{tpu_custom_call.1} parent=63 // pred_check
        %p1069 = pneg %p243
      $region66: #{tpu_custom_call.1} parent=63 // pred_check_branch
        %1071 = sbr.rel (%p1069) target = $region68
      $region67: #{tpu_custom_call.1} parent=63 // pred_region
        %s1072 = smul.u32 16, %s21
        %p1073 = scmp.lt.s32.totalorder %s1072, 31
        %s1074 = scalar_select %p1073, %s1072, 31
        %s1075 = smul.addr %s1074, 8
        %s1076 = scalar_lea.vmem %s9, %s1075
      $region68: #{tpu_custom_call.1} parent=63 // pred_fallthru
        _
    $region64: #{tpu_custom_call.1} parent=5 // pred_fallthru
      _
  $region6: #{tpu_custom_call.1} parent=0 // loop_footer
    %s19 = sadd.s32 1, %s15
  $region7: #{tpu_custom_call.1} parent=0 // loop_footer_branch
    %14 = sbr.rel target = $region3
  $region8: #{tpu_custom_call.1} parent=0 // loop_exit
    _

</llo_original>
